<compile_context>
chip_gen: v7x
topology: tpu7x:2x2x1
jax: 0.10.0
libtpu: 0.0.40
codegen_flags: <defaults>
</compile_context>

<pallas_src>
import functools

import jax
import jax.numpy as jnp
from jax.experimental import pallas as pl
from jax.experimental.pallas import tpu as pltpu

POS_WEIGHT = 10.0
_VMEM_BUDGET = 24 << 20   # double-buffered blocks + scratch budget (v7x-safe)


def _round_up(n, m):
    return ((n + m - 1) // m) * m


def _sublane(dtype):
    """Sublane multiple required for a block dim of this dtype (8/16/32)."""
    return 8 * max(1, 4 // jnp.dtype(dtype).itemsize)


def _choose_b_tiling(B, st, tile_b):
    if tile_b is not None:
        tb = _round_up(max(int(tile_b), 1), st)
    else:
        groups = _round_up(B, st) // st
        tb_groups = min(max(256 // st, 1), groups)
        if groups >= 2:
            # Keep >= 2 blocks on the parallel axis so both v7x TensorCores get work.
            tb_groups = max(1, min(tb_groups, groups // 2))
        tb = tb_groups * st
    return tb, _round_up(B, tb)


def _choose_t_tiling(T, tile_t_max):
    """Pick a lane-aligned tile_t <= tile_t_max that minimizes T padding."""
    t128 = _round_up(T, 128)
    n_chunks = pl.cdiv(t128, tile_t_max)
    tile_t = _round_up(pl.cdiv(t128, n_chunks), 128)
    return tile_t, n_chunks * tile_t  # (tile_t, T_pad)


def _vmem_bytes(tile_b, tile_t, x_itemsize, t_itemsize):
    in_bytes = 2 * tile_b * tile_t * (x_itemsize + t_itemsize)  # double-buffered inputs
    acc_bytes = tile_b * tile_t * 4                             # scratch accumulator
    out_bytes = 2 * tile_b * 128 * 4                            # lane-dense output
    misc = 2 * tile_b * 4 + (64 << 10)
    return in_bytes + acc_bytes + out_bytes + misc


def _masked_bce_kernel(nblk_ref, lens_ref, x_ref, t_ref, o_ref, acc_ref, *, pos_weight):
    i = pl.program_id(0)
    j = pl.program_id(1)

    # Scratch accumulator is resident across the T (reduction) axis: zero at j==0.
    @pl.when(j == 0)
    def _zero():
        acc_ref[...] = jnp.zeros_like(acc_ref)

    # Skip fully-masked T tiles (their DMA is also skipped via the clamped index_map).
    @pl.when(j < nblk_ref[i])
    def _accumulate():
        x = x_ref[...].astype(jnp.float32)          # (tile_b, tile_t)
        y = t_ref[...].astype(jnp.float32)
        tb, tt = x.shape
        # Grid-invariant iota; shift lens by the tile offset instead (VALU trim).
        col = jax.lax.broadcasted_iota(jnp.int32, (tb, tt), 1)
        limit = lens_ref[...] - j * tt              # (tile_b, 1)
        valid = col < limit                         # pad_mask(lens, max_len) for this tile

        # BCE-with-logits, pos_weight p, element weight w = mask:
        #   l = w * [ (1-y)*x + ((p-1)*y + 1) * softplus(-x) ]
        # with softplus(-x) = max(-x,0) + log1p(exp(-|x|)) (overflow-safe).
        sp_neg_x = jnp.maximum(-x, 0.0) + jnp.log1p(jnp.exp(-jnp.abs(x)))
        per_elem = (1.0 - y) * x + ((pos_weight - 1.0) * y + 1.0) * sp_neg_x
        acc_ref[...] += jnp.where(valid, per_elem, 0.0)

    # Fold the (tile_b, tile_t) accumulator into a lane-dense (tile_b, 128) output
    # with static 128-lane slices; runs once per B block.
    @pl.when(j == pl.num_programs(1) - 1)
    def _finalize():
        tt = acc_ref.shape[1]
        red = acc_ref[:, 0:128]
        for c in range(1, tt // 128):
            red = red + acc_ref[:, c * 128:(c + 1) * 128]
        o_ref[...] = red


def masked_bce(x, target, lens, *, pos_weight=POS_WEIGHT, tile_b=None, tile_t=None):
    B, T = x.shape
    assert target.shape == (B, T)

    # Sublane-aligned batch tile (dtype-aware: f32->8, bf16->16, int8->32).
    st = max(_sublane(x.dtype), _sublane(target.dtype), 8)
    tile_b, B_pad = _choose_b_tiling(B, st, tile_b)

    # Lane-aligned sequence tile; aim for >= ~1 MiB per input per grid step.
    if tile_t is None:
        tile_t_max = 2048 if tile_b >= 128 else 4096
    else:
        tile_t_max = _round_up(max(int(tile_t), 128), 128)
    tile_t, T_pad = _choose_t_tiling(T, tile_t_max)
    while tile_t > 512 and _vmem_bytes(tile_b, tile_t, x.dtype.itemsize,
                                       target.dtype.itemsize) > _VMEM_BUDGET:
        tile_t, T_pad = _choose_t_tiling(T, tile_t // 2)

    def pad2d(a):
        return jnp.pad(a, ((0, B_pad - B), (0, T_pad - T)))

    x_p = pad2d(x)            # zero padding keeps per-element loss finite
    t_p = pad2d(target)

    # Clipped lens: matches pad_mask semantics exactly (lens > T == full row,
    # lens <= 0 == empty row) and keeps padded columns masked out.
    lens_c = jnp.clip(lens.reshape(B).astype(jnp.int32), 0, T)
    lens_pad = jnp.pad(lens_c, (0, B_pad - B))        # padded rows: lens = 0
    nb = B_pad // tile_b
    nt = T_pad // tile_t
    # Number of T blocks containing any valid position, per B block (scalar prefetch).
    nblk = ((jnp.max(lens_pad.reshape(nb, tile_b), axis=1) + (tile_t - 1)) // tile_t
            ).astype(jnp.int32)
    lens_p = lens_pad.reshape(B_pad, 1)

    def xy_map(i, j, nblk_ref):
        # Clamp j to the last valid T block: repeated block index => DMA skipped.
        last = jnp.maximum(nblk_ref[i] - 1, 0)
        return (i, jnp.minimum(j, last))

    vmem_limit = min(
        32 << 20,
        max(16 << 20,
            _round_up(_vmem_bytes(tile_b, tile_t, x.dtype.itemsize,
                                  target.dtype.itemsize), 1 << 20) + (4 << 20)))

    kernel = functools.partial(_masked_bce_kernel, pos_weight=float(pos_weight))

    partial = pl.pallas_call(
        kernel,
        out_shape=jax.ShapeDtypeStruct((B_pad, 128), jnp.float32),
        grid_spec=pltpu.PrefetchScalarGridSpec(
            num_scalar_prefetch=1,
            grid=(nb, nt),
            in_specs=[
                # lens block only changes with the B-block index (negligible traffic).
                pl.BlockSpec((tile_b, 1), lambda i, j, nblk_ref: (i, 0)),
                pl.BlockSpec((tile_b, tile_t), xy_map),   # x
                pl.BlockSpec((tile_b, tile_t), xy_map),   # target
            ],
            # Output block index independent of j -> resident per B block.
            out_specs=pl.BlockSpec((tile_b, 128), lambda i, j, nblk_ref: (i, 0)),
            scratch_shapes=[pltpu.VMEM((tile_b, tile_t), jnp.float32)],
        ),
        compiler_params=pltpu.CompilerParams(
            dimension_semantics=("parallel", "arbitrary"),
            vmem_limit_bytes=vmem_limit,
        ),
    )(nblk, lens_p, x_p, t_p)

    loss_sum = jnp.sum(partial)
    # mask.sum() == sum_b clip(lens_b, 0, T); no per-tile mask reductions in-kernel.
    mask_sum = jnp.sum(lens_c).astype(jnp.float32)
    # Note: all-zero lens yields 0/0 -> NaN, matching the PyTorch module.
    return loss_sum / mask_sum


def masked_bce_ref(x, target, lens, pos_weight=POS_WEIGHT):
    """Pure-JAX reference mirroring the PyTorch module."""
    B, T = x.shape
    x = x.astype(jnp.float32)
    target = target.astype(jnp.float32)
    mask = (jnp.arange(T)[None, :] < lens.reshape(B, 1)).astype(jnp.float32)
    sp_neg_x = jnp.maximum(-x, 0.0) + jnp.log1p(jnp.exp(-jnp.abs(x)))
    per = (1.0 - target) * x + ((pos_weight - 1.0) * target + 1.0) * sp_neg_x
    return jnp.sum(mask * per) / jnp.sum(mask)


if __name__ == "__main__":
    key = jax.random.PRNGKey(0)

    def run_case(B, T, case_key, x_dtype=jnp.float32, t_dtype=jnp.float32,
                 max_len=None, **kw):
        kx, kt, kl = jax.random.split(case_key, 3)
        x = jax.random.normal(kx, (B, T), dtype=jnp.float32).astype(x_dtype)
        target = jax.random.bernoulli(kt, p=0.3, shape=(B, T)).astype(t_dtype)
        hi = (max_len if max_len is not None else T) + 1
        lens = jax.random.randint(kl, (B,), minval=1, maxval=hi, dtype=jnp.int32)

        loss = jax.block_until_ready(masked_bce(x, target, lens, **kw))
        ref = jax.block_until_ready(
            masked_bce_ref(x.astype(jnp.float32), target.astype(jnp.float32), lens))
        assert jnp.allclose(loss, ref, rtol=1e-5, atol=1e-5), (B, T, loss, ref)

    k1, k2, k3, k4, k5 = jax.random.split(key, 5)
    run_case(4, 256, k1)                                    # B < sublane tile -> padded batch
    run_case(5, 300, k2)                                    # ragged B and T -> zero-padding path
    run_case(16, 2048, k3, tile_b=8, tile_t=1024)           # multi-block grid: 2 parallel x 2 reduce
    run_case(16, 2048, k4, max_len=200, tile_t=512)         # ragged lens -> masked T-tiles skipped
    run_case(16, 512, k5, x_dtype=jnp.bfloat16, t_dtype=jnp.int8)  # compact-dtype (bf16 x, int8 target)

    print("KERNEL_OK")
</pallas_src>

<mosaic_0001>
module attributes {stable_mosaic.version = 11 : i64} {
  func.func @_masked_bce_kernel(%arg0: i32, %arg1: i32, %arg2: memref<1xi32, #tpu.memory_space<smem>>, %arg3: memref<8x1xi32, #tpu.memory_space<vmem>>, %arg4: memref<8x256xf32, #tpu.memory_space<vmem>>, %arg5: memref<8x256xf32, #tpu.memory_space<vmem>>, %arg6: memref<8x128xf32, #tpu.memory_space<vmem>>, %arg7: memref<8x256xf32, #tpu.memory_space<vmem>>) attributes {dimension_semantics = [#tpu.dimension_semantics<parallel>, #tpu.dimension_semantics<arbitrary>], iteration_bounds = array<i64: 1, 1>, scalar_prefetch = 1 : i64, scratch_operands = 1 : i64, tpu.core_type = #tpu.core_type<tc>, window_params = [{transform_indices = @transform_0, window_bounds = array<i64: 8, 1>}, {transform_indices = @transform_1, window_bounds = array<i64: 8, 256>}, {transform_indices = @transform_2, window_bounds = array<i64: 8, 256>}, {transform_indices = @transform_3, window_bounds = array<i64: 8, 128>}]} {
    %c0_i32 = arith.constant 0 : i32
    %0 = arith.cmpi eq, %arg1, %c0_i32 : i32
    %1 = arith.extui %0 : i1 to i32
    %c0_i32_0 = arith.constant 0 : i32
    %2 = arith.cmpi ne, %1, %c0_i32_0 : i32
    scf.if %2 {
      %cst = arith.constant 0.000000e+00 : f32
      %11 = vector.broadcast %cst : f32 to vector<8x256xf32>
      %c0 = arith.constant 0 : index
      %c0_4 = arith.constant 0 : index
      %12 = vector.load %arg7[%c0, %c0_4] : memref<8x256xf32, #tpu.memory_space<vmem>>, vector<8x256xf32>
      tpu.vector_store %arg7[%c0, %c0_4], %11 {strides = array<i32>} : memref<8x256xf32, #tpu.memory_space<vmem>>, vector<8x256xf32>,
    } else {
    }
    %3 = arith.index_cast %arg0 : i32 to index
    %4 = memref.load %arg2[%3] : memref<1xi32, #tpu.memory_space<smem>>
    %5 = arith.cmpi slt, %arg1, %4 : i32
    %6 = arith.extui %5 : i1 to i32
    %c0_i32_1 = arith.constant 0 : i32
    %7 = arith.cmpi ne, %6, %c0_i32_1 : i32
    scf.if %7 {
      %c0 = arith.constant 0 : index
      %c0_4 = arith.constant 0 : index
      %11 = vector.load %arg4[%c0, %c0_4] : memref<8x256xf32, #tpu.memory_space<vmem>>, vector<8x256xf32>
      %c0_5 = arith.constant 0 : index
      %c0_6 = arith.constant 0 : index
      %12 = vector.load %arg5[%c0_5, %c0_6] : memref<8x256xf32, #tpu.memory_space<vmem>>, vector<8x256xf32>
      %13 = tpu.iota {dimensions = array<i32: 1>} : vector<8x256xi32>
      %c0_7 = arith.constant 0 : index
      %c0_8 = arith.constant 0 : index
      %14 = vector.load %arg3[%c0_7, %c0_8] : memref<8x1xi32, #tpu.memory_space<vmem>>, vector<8x1xi32>
      %c256_i32 = arith.constant 256 : i32
      %15 = arith.muli %arg1, %c256_i32 : i32
      %16 = vector.broadcast %15 : i32 to vector<8x1xi32>
      %17 = arith.subi %14, %16 : vector<8x1xi32>
      %18 = vector.broadcast %17 : vector<8x1xi32> to vector<8x256xi32>
      %19 = arith.cmpi slt, %13, %18 : vector<8x256xi32>
      %cst = arith.constant 0.000000e+00 : f32
      %20 = vector.broadcast %cst : f32 to vector<8x256xf32>
      %21 = arith.subf %20, %11 : vector<8x256xf32>
      %cst_9 = arith.constant 0.000000e+00 : f32
      %22 = vector.broadcast %cst_9 : f32 to vector<8x256xf32>
      %23 = arith.maximumf %21, %22 : vector<8x256xf32>
      %24 = math.absf %11 : vector<8x256xf32>
      %cst_10 = arith.constant 0.000000e+00 : f32
      %25 = vector.broadcast %cst_10 : f32 to vector<8x256xf32>
      %26 = arith.subf %25, %24 : vector<8x256xf32>
      %27 = math.exp %26 : vector<8x256xf32>
      %28 = math.log1p %27 : vector<8x256xf32>
      %29 = arith.addf %23, %28 : vector<8x256xf32>
      %cst_11 = arith.constant 1.000000e+00 : f32
      %30 = vector.broadcast %cst_11 : f32 to vector<8x256xf32>
      %31 = arith.subf %30, %12 : vector<8x256xf32>
      %32 = arith.mulf %31, %11 : vector<8x256xf32>
      %cst_12 = arith.constant 9.000000e+00 : f32
      %33 = vector.broadcast %cst_12 : f32 to vector<8x256xf32>
      %34 = arith.mulf %33, %12 : vector<8x256xf32>
      %cst_13 = arith.constant 1.000000e+00 : f32
      %35 = vector.broadcast %cst_13 : f32 to vector<8x256xf32>
      %36 = arith.addf %34, %35 : vector<8x256xf32>
      %37 = arith.mulf %36, %29 : vector<8x256xf32>
      %38 = arith.addf %32, %37 : vector<8x256xf32>
      %c0_14 = arith.constant 0 : index
      %c0_15 = arith.constant 0 : index
      %39 = vector.load %arg7[%c0_14, %c0_15] : memref<8x256xf32, #tpu.memory_space<vmem>>, vector<8x256xf32>
      %cst_16 = arith.constant 0.000000e+00 : f32
      %40 = vector.broadcast %cst_16 : f32 to vector<8x256xf32>
      %41 = arith.select %19, %38, %40 : vector<8x256xi1>, vector<8x256xf32>
      %42 = arith.addf %39, %41 : vector<8x256xf32>
      %c0_17 = arith.constant 0 : index
      %c0_18 = arith.constant 0 : index
      %43 = vector.load %arg7[%c0_17, %c0_18] : memref<8x256xf32, #tpu.memory_space<vmem>>, vector<8x256xf32>
      tpu.vector_store %arg7[%c0_17, %c0_18], %42 {strides = array<i32>} : memref<8x256xf32, #tpu.memory_space<vmem>>, vector<8x256xf32>,
    } else {
    }
    %c0_i32_2 = arith.constant 0 : i32
    %8 = arith.cmpi eq, %arg1, %c0_i32_2 : i32
    %9 = arith.extui %8 : i1 to i32
    %c0_i32_3 = arith.constant 0 : i32
    %10 = arith.cmpi ne, %9, %c0_i32_3 : i32
    scf.if %10 {
      %c0 = arith.constant 0 : index
      %c0_4 = arith.constant 0 : index
      %11 = vector.load %arg7[%c0, %c0_4] : memref<8x256xf32, #tpu.memory_space<vmem>>, vector<8x128xf32>
      %c0_5 = arith.constant 0 : index
      %c128 = arith.constant 128 : index
      %12 = vector.load %arg7[%c0_5, %c128] : memref<8x256xf32, #tpu.memory_space<vmem>>, vector<8x128xf32>
      %13 = arith.addf %11, %12 : vector<8x128xf32>
      %c0_6 = arith.constant 0 : index
      %c0_7 = arith.constant 0 : index
      %14 = vector.load %arg6[%c0_6, %c0_7] : memref<8x128xf32, #tpu.memory_space<vmem>>, vector<8x128xf32>
      tpu.vector_store %arg6[%c0_6, %c0_7], %13 {strides = array<i32>} : memref<8x128xf32, #tpu.memory_space<vmem>>, vector<8x128xf32>,
    } else {
    }
    return
  }
  func.func @transform_0(%arg0: i32, %arg1: i32, %arg2: memref<1xi32, #tpu.memory_space<smem>>) -> (i32, i32) {
    %c0_i32 = arith.constant 0 : i32
    %c0_i32_0 = arith.constant 0 : i32
    return %arg0, %c0_i32 : i32, i32
  }
  func.func @transform_1(%arg0: i32, %arg1: i32, %arg2: memref<1xi32, #tpu.memory_space<smem>>) -> (i32, i32) {
    %0 = arith.index_cast %arg0 : i32 to index
    %1 = memref.load %arg2[%0] : memref<1xi32, #tpu.memory_space<smem>>
    %c1_i32 = arith.constant 1 : i32
    %2 = arith.subi %1, %c1_i32 : i32
    %c0_i32 = arith.constant 0 : i32
    %3 = arith.maxsi %2, %c0_i32 : i32
    %4 = arith.minsi %arg1, %3 : i32
    %c0_i32_0 = arith.constant 0 : i32
    return %arg0, %4 : i32, i32
  }
  func.func @transform_2(%arg0: i32, %arg1: i32, %arg2: memref<1xi32, #tpu.memory_space<smem>>) -> (i32, i32) {
    %0 = arith.index_cast %arg0 : i32 to index
    %1 = memref.load %arg2[%0] : memref<1xi32, #tpu.memory_space<smem>>
    %c1_i32 = arith.constant 1 : i32
    %2 = arith.subi %1, %c1_i32 : i32
    %c0_i32 = arith.constant 0 : i32
    %3 = arith.maxsi %2, %c0_i32 : i32
    %4 = arith.minsi %arg1, %3 : i32
    %c0_i32_0 = arith.constant 0 : i32
    return %arg0, %4 : i32, i32
  }
  func.func @transform_3(%arg0: i32, %arg1: i32, %arg2: memref<1xi32, #tpu.memory_space<smem>>) -> (i32, i32) {
    %c0_i32 = arith.constant 0 : i32
    %c0_i32_0 = arith.constant 0 : i32
    return %arg0, %c0_i32 : i32, i32
  }
}

</mosaic_0001>

<llo_original>
// kernel: tpu_custom_call.1
$region0: #{tpu_custom_call.1}
  #allocation0 [shape = 'u32[]', space=smem, size = 0x4, offset = 0x4, fixed_abs, tag = 'smem constant byte address 0x4 - core index']
  #allocation1 [shape = 'u32[144,128]{1,0:T(1,128)}', space=vmem, size = 0x12000, scoped, tag = 'internal scratch']
  #allocation2 [shape = 'f32[8,256]{1,0:T(8,128)}', space=vmem, size = 0x2000, scoped, tag = 'scratch operand']
  #allocation3 [shape = 's32[1]{0}', space=sflag, size = 0x4, scoped, tag = 'scoped memory for tpu_custom_call.1']
  #allocation4 [shape = 's32[1]{0:T(128)S(6)}', space=smem, size = 0x200, scoped, tag = 'prefetched SMEM operand 0']
  %s0 = inlined_call_operand.<no memory space> [shape: s32[1], index: 0, kind: input, shape index: {}]
  %s1 = inlined_call_operand.vmem [shape: s32[8,1], index: 1, kind: input, shape index: {}]
  %s2 = inlined_call_operand.vmem [shape: f32[8,256], index: 2, kind: input, shape index: {}]
  %s3 = inlined_call_operand.hbm [shape: f32[8,256], index: 3, kind: input, shape index: {}]
  %s4 = inlined_call_operand.hbm [shape: f32[8,128], index: 4, kind: output, shape index: {}]
  %s5 = sld [smem:[#allocation0]]
  $region38: #{tpu_custom_call.1} parent=0
    _
  %s7 = ssub.s32 1, %s5
  %s8 = scalar_select 0, %s7, %s5
  %9 = sst [smem:[#allocation4]] %s0
  $region1: #{tpu_custom_call.1} parent=0
    #allocation5 [shape = 'u8[8192]{0}', space=vmem, size = 0x2000, scoped, tag = 'input window, operand 3, single buffered']
    #allocation6 [shape = 's32[1]{0}', space=sflag, size = 0x4, scoped, tag = 'scoped memory for tpu_custom_call.1']
    #allocation7 [shape = 's32[1]{0}', space=sflag, size = 0x4, scoped, tag = 'scoped memory for tpu_custom_call.1']
    #allocation8 [shape = 'u8[4096]{0}', space=vmem, size = 0x1000, scoped, tag = 'output window, operand 0, single buffered']
    %10 = vsyncpa [#allocation6], 0
    %11 = vsyncpa [#allocation7], 0
    // Predicated region
    $region2: #{tpu_custom_call.1} parent=1 // pred_check
      _
    $region3: #{tpu_custom_call.1} parent=1 // pred_check_branch
      %13 = sbr.rel (0) target = $region5
    $region4: #{tpu_custom_call.1} parent=1 // pred_region
      _
    $region5: #{tpu_custom_call.1} parent=1 // pred_fallthru
      _
    // Predicated region
    $region6: #{tpu_custom_call.1} parent=1 // pred_check
      _
    $region7: #{tpu_custom_call.1} parent=1 // pred_check_branch
      %15 = sbr.rel (0) target = $region9
    $region8: #{tpu_custom_call.1} parent=1 // pred_region
      %s16 = sld [smem:[#allocation4]]
      %s17 = ssub.s32 %s16, 1
      %p18 = scmp.gt.s32.totalorder %s17, 0
      %s19 = scalar_select %p18, %s17, 0
      %p20 = scmp.lt.s32.totalorder 0, %s19
      %s21 = scalar_select %p20, 0, %s19
      %s22 = smul.u32 2, %s21
      %p23 = scmp.lt.s32.totalorder %s22, 1
      %s24 = scalar_select %p23, %s22, 1
      %s25 = smul.addr %s24, 8
      %s26 = scalar_lea.vmem %s2, %s25
      %s27 = sld [smem:[#allocation4]]
      %s28 = ssub.s32 %s27, 1
      %p29 = scmp.gt.s32.totalorder %s28, 0
      %s30 = scalar_select %p29, %s28, 0
      %p31 = scmp.lt.s32.totalorder 0, %s30
      %s32 = scalar_select %p31, 0, %s30
      %s33 = smul.u32 2, %s32
    $region9: #{tpu_custom_call.1} parent=1 // pred_fallthru
      _
    // Predicated region
    $region10: #{tpu_custom_call.1} parent=1 // pred_check
      _
    $region11: #{tpu_custom_call.1} parent=1 // pred_check_branch
      %35 = sbr.rel (0) target = $region13
    $region12: #{tpu_custom_call.1} parent=1 // pred_region
      %s36 = sld [smem:[#allocation4]]
      %s37 = ssub.s32 %s36, 1
      %p38 = scmp.gt.s32.totalorder %s37, 0
      %s39 = scalar_select %p38, %s37, 0
      %p40 = scmp.lt.s32.totalorder 0, %s39
      %s41 = scalar_select %p40, 0, %s39
      %s42 = smul.u32 2, %s41
      %s44 = ssub.s32 256, 256
      %45 = vsyncadd [#allocation6], %s44
      %s46 = smul.addr %s42, 128
      %s47 = scalar_lea.hbm %s3, %s46
      %s49 = sshll.u32 [#allocation5], 4
      %s50 = int_to_ptr.vmem [resolvable:$true] %s49
      %52 = dma.hbm_to_vmem [thread:$0]  %s47, 256, %s50, [#allocation6]
    $region13: #{tpu_custom_call.1} parent=1 // pred_fallthru
      _
    // Predicated region
    $region14: #{tpu_custom_call.1} parent=1 // pred_check
      _
    $region15: #{tpu_custom_call.1} parent=1 // pred_check_branch
      %54 = sbr.rel (0) target = $region17
    $region16: #{tpu_custom_call.1} parent=1 // pred_region
      %55 = dma.done [#allocation6], 256
    $region17: #{tpu_custom_call.1} parent=1 // pred_fallthru
      _
    %s56 = sld [smem:[#allocation4]]
    %s57 = ssub.s32 %s56, 1
    %p58 = scmp.gt.s32.totalorder %s57, 0
    %s59 = scalar_select %p58, %s57, 0
    %p60 = scmp.lt.s32.totalorder 0, %s59
    %s61 = scalar_select %p60, 0, %s59
    %s62 = smul.u32 2, %s61
    %p63 = scmp.lt.s32.totalorder %s62, 1
    %s64 = scalar_select %p63, %s62, 1
    %s65 = smul.addr %s64, 8
    %s66 = scalar_lea.vmem %s2, %s65
    %s67 = sld [smem:[#allocation4]]
    %s68 = ssub.s32 %s67, 1
    %p69 = scmp.gt.s32.totalorder %s68, 0
    %s70 = scalar_select %p69, %s68, 0
    %p71 = scmp.lt.s32.totalorder 0, %s70
    %s72 = scalar_select %p71, 0, %s70
    %s73 = smul.u32 2, %s72
    %p74 = scmp.lt.s32.totalorder %s73, 1
    %s75 = scalar_select %p74, %s73, 1
    %s76 = smul.addr %s75, 8
    %s77 = scalar_lea.vmem %s2, %s76
    %s78 = sld [smem:[#allocation4]]
    %s79 = ssub.s32 %s78, 1
    %p80 = scmp.gt.s32.totalorder %s79, 0
    %s81 = scalar_select %p80, %s79, 0
    %p82 = scmp.lt.s32.totalorder 0, %s81
    %s83 = scalar_select %p82, 0, %s81
    %s84 = smul.u32 2, %s83
    %s85 = sld [smem:[#allocation4]]
    %s86 = ssub.s32 %s85, 1
    %p87 = scmp.gt.s32.totalorder %s86, 0
    %s88 = scalar_select %p87, %s86, 0
    %p89 = scmp.lt.s32.totalorder 0, %s88
    %s90 = scalar_select %p89, 0, %s88
    %s91 = smul.u32 2, %s90
    %p92 = scmp.eq.s32.totalorder 0, 0
    // Predicated region
    $region18: #{tpu_custom_call.1} parent=1 // pred_check
      %p93 = pneg %p92
    $region19: #{tpu_custom_call.1} parent=1 // pred_check_branch
      %95 = sbr.rel (%p93) target = $region21
    $region20: #{tpu_custom_call.1} parent=1 // pred_region
      %96 = vst [vmem:[#allocation2] sm:$0xff] 0.0
      %97 = vst [vmem:[#allocation2 + $0x8] sm:$0xff] 0.0
    $region21: #{tpu_custom_call.1} parent=1 // pred_fallthru
      _
    %s98 = sld [smem:[#allocation4]]
    %p99 = scmp.lt.s32.totalorder 0, %s98
    // Predicated region
    $region22: #{tpu_custom_call.1} parent=1 // pred_check
      %p100 = pneg %p99
    $region23: #{tpu_custom_call.1} parent=1 // pred_check_branch
      %102 = sbr.rel (%p100) target = $region25
    $region24: #{tpu_custom_call.1} parent=1 // pred_region
      %v103 = vld [vmem:[%s77] sm:$0xff]
      %v104 = vld [vmem:[%s77 + $0x8] sm:$0xff]
      %v105 = vld [vmem:[#allocation5] sm:$0xff]
      %v106 = vld [vmem:[#allocation5 + $0x8] sm:$0xff]
      %v107 = vlaneseq
      %v108 = vand.u32 %v107, 127
      %v109 = vadd.s32 %v108, 128
      %v110 = vld [vmem:[%s1] sm:$0xff]
      %s111 = smul.u32 0, 256
      %v112 = vstv %s111
      %v113 = vsub.s32 %v110, %v112
      %114 = vset.pattern.permute.xlu0 0
      %115 = vperm.xlu0 %114, %v113
      %v116 = vpop.permute.xlu0 %115
      %vm117 = vcmp.lt.s32.totalorder %v108, %v116
      %vm118 = vcmp.lt.s32.totalorder %v109, %v116
      %v119 = vsub.f32 0.0, %v103
      %v120 = vsub.f32 0.0, %v104
      %v121 = vmax.f32 %v119, 0.0
      %v122 = vmax.f32 %v120, 0.0
      %v123 = vand.u32 2147483647, %v103
      %v124 = vand.u32 2147483647, %v104
      %v125 = vsub.f32 0.0, %v123
      %v126 = vsub.f32 0.0, %v124
      %v127 = vmul.f32 %v125, 1.442695
      %v128 = vpow.pop %v127
      %v129 = vmul.f32 %v126, 1.442695
      %v130 = vpow.pop %v129
      %v131 = vadd.f32 %v128, 1.0
      %v132 = vlog2.pop %v131
      %v133 = vmul.f32 %v132, 0.6931472
      %v134 = vmul.f32 -0.5, %v128
      %v135 = vadd.f32 %v134, 1.0
      %v136 = vmul.f32 %v135, %v128
      %v137 = vand.u32 2147483647, %v128
      %vm138 = vcmp.lt.f32.partialorder %v137, 0.0004427343
      %v139 = vsel %vm138, %v136, %v133
      %v140 = vadd.f32 %v130, 1.0
      %v141 = vlog2.pop %v140
      %v142 = vmul.f32 %v141, 0.6931472
      %v143 = vmul.f32 -0.5, %v130
      %v144 = vadd.f32 %v143, 1.0
      %v145 = vmul.f32 %v144, %v130
      %v146 = vand.u32 2147483647, %v130
      %vm147 = vcmp.lt.f32.partialorder %v146, 0.0004427343
      %v148 = vsel %vm147, %v145, %v142
      %v149 = vadd.f32 %v121, %v139
      %v150 = vadd.f32 %v122, %v148
      %v151 = vsub.f32 1.0, %v105
      %v152 = vsub.f32 1.0, %v106
      %v153 = vmul.f32 %v151, %v103
      %v154 = vmul.f32 %v152, %v104
      %v155 = vmul.f32 %v105, 9.0
      %v156 = vmul.f32 %v106, 9.0
      %v157 = vadd.f32 %v155, 1.0
      %v158 = vadd.f32 %v156, 1.0
      %v159 = vmul.f32 %v157, %v149
      %v160 = vmul.f32 %v158, %v150
      %v161 = vadd.f32 %v153, %v159
      %v162 = vadd.f32 %v154, %v160
      %v163 = vld [vmem:[#allocation2] sm:$0xff]
      %v164 = vld [vmem:[#allocation2 + $0x8] sm:$0xff]
      %v165 = vsel %vm117, %v161, 0.0
      %v166 = vsel %vm118, %v162, 0.0
      %v167 = vadd.f32 %v163, %v165
      %v168 = vadd.f32 %v164, %v166
      %169 = vst [vmem:[#allocation2] sm:$0xff] %v167
      %170 = vst [vmem:[#allocation2 + $0x8] sm:$0xff] %v168
    $region25: #{tpu_custom_call.1} parent=1 // pred_fallthru
      _
    // Predicated region
    $region26: #{tpu_custom_call.1} parent=1 // pred_check
      %p171 = pneg %p92
    $region27: #{tpu_custom_call.1} parent=1 // pred_check_branch
      %173 = sbr.rel (%p171) target = $region29
    $region28: #{tpu_custom_call.1} parent=1 // pred_region
      %v174 = vld [vmem:[#allocation2] sm:$0xff]
      %v175 = vld [vmem:[#allocation2 + $0x8] sm:$0xff]
      %v176 = vadd.f32 %v174, %v175
      %177 = vst [vmem:[#allocation8] sm:$0xff] %v176
    $region29: #{tpu_custom_call.1} parent=1 // pred_fallthru
      _
    // Predicated region
    $region30: #{tpu_custom_call.1} parent=1 // pred_check
      _
    $region31: #{tpu_custom_call.1} parent=1 // pred_check_branch
      %179 = sbr.rel (0) target = $region33
    $region32: #{tpu_custom_call.1} parent=1 // pred_region
      %s181 = ssub.s32 128, 128
      %182 = vsyncadd [#allocation7], %s181
      %s184 = sshll.u32 [#allocation8], 4
      %s185 = int_to_ptr.vmem [resolvable:$true] %s184
      %187 = dma.vmem_to_hbm [thread:$0]  %s185, 128, %s4, [#allocation7]
    $region33: #{tpu_custom_call.1} parent=1 // pred_fallthru
      _
    // Predicated region
    $region34: #{tpu_custom_call.1} parent=1 // pred_check
      _
    $region35: #{tpu_custom_call.1} parent=1 // pred_check_branch
      %189 = sbr.rel (0) target = $region37
    $region36: #{tpu_custom_call.1} parent=1 // pred_region
      %190 = dma.done [#allocation7], 128
    $region37: #{tpu_custom_call.1} parent=1 // pred_fallthru
      _
    %191 = vsyncpa [#allocation6], 1
    %192 = vsyncpa [#allocation7], 1

</llo_original>
